<compile_context>
chip_gen: v5e
topology: v5e:2x2
jax: 0.10.0
libtpu: 0.0.40
codegen_flags: <defaults>
</compile_context>

<pallas_src>
import functools

import jax
import jax.numpy as jnp
from jax.experimental import pallas as pl
from jax.experimental.pallas import tpu as pltpu


NEG_SLOPE = 0.01   # PyTorch nn.LeakyReLU default negative_slope
LANE = 128         # TPU lane width (last dim)
SUBLANE = 8        # f32 sublane count (second-to-last dim)


def _round_up(n, m):
    return ((n + m - 1) // m) * m


def _leaky_relu(x):
    return jnp.where(x > 0, x, NEG_SLOPE * x)


def decoder_kernel(x_ref, w1_ref, b1_ref, w2_ref, b2_ref, w3_ref, b3_ref, o_ref):
    # Layer 1: Linear + LeakyReLU.  K = raw latent dim (unpadded in HBM);
    # Mosaic pads the contraction internally in VMEM.
    h = jnp.dot(x_ref[...], w1_ref[...], preferred_element_type=jnp.float32)
    h = _leaky_relu(h + b1_ref[...])
    # Layer 2: Linear + LeakyReLU
    h = jnp.dot(h, w2_ref[...], preferred_element_type=jnp.float32)
    h = _leaky_relu(h + b2_ref[...])
    # Layer 3: Linear + Sigmoid (logistic -> EUP slot; no explicit divide)
    h = jnp.dot(h, w3_ref[...], preferred_element_type=jnp.float32)
    o_ref[...] = jax.nn.sigmoid(h + b3_ref[...]).astype(o_ref.dtype)


@functools.partial(jax.jit, static_argnames=("out_dim", "block_batch"))
def decoder_forward(x, padded_params, *, out_dim, block_batch=1024):
    """x: [B, latent] f32, padded_params from pad_params() -> [B, out_dim] f32."""
    w1p, b1p, w2p, b2p, w3p, b3p = padded_params
    B, latent = x.shape
    hidden_p = w1p.shape[1]
    out_pad = w3p.shape[1]

    # --- Batch tiling --------------------------------------------------------
    # Large tiles amortize the ~0.35us/step pipeline overhead; cap at
    # ceil(B/2) (sublane-rounded) so the grid has >= 2 steps whenever B allows,
    # letting "parallel" semantics shard across both v7x TensorCores.
    half = _round_up(-(-B // 2), SUBLANE)
    tm = max(SUBLANE, min(_round_up(block_batch, SUBLANE), half))
    b_pad = _round_up(B, tm)
    xp = x if b_pad == B else jnp.pad(x, ((0, b_pad - B), (0, 0)))
    grid = (b_pad // tm,)

    # Advisory cost estimate for the XLA scheduler around this custom call.
    flops = 2 * b_pad * (latent * hidden_p + hidden_p * hidden_p
                         + hidden_p * out_pad)
    bytes_accessed = 4 * (xp.size + w1p.size + b1p.size + w2p.size + b2p.size
                          + w3p.size + b3p.size + b_pad * out_pad)
    cost = pl.CostEstimate(flops=flops,
                           transcendentals=b_pad * out_pad,
                           bytes_accessed=bytes_accessed)

    # Explicit VMEM budget: double-buffered activations + resident weights +
    # headroom for the (tm, hidden_p) f32 intermediates.  Needed when raising
    # block_batch on v5e (16 MiB default scoped VMEM); clamped so it stays
    # sane on v7x (64 MiB physical VMEM).
    w_bytes = 4 * (w1p.size + b1p.size + w2p.size + b2p.size
                   + w3p.size + b3p.size)
    act_bytes = 4 * tm * (latent + out_pad)
    interm_bytes = 4 * tm * hidden_p * 2
    vmem_need = 2 * (w_bytes + act_bytes) + interm_bytes
    vmem_limit = int(min(max(vmem_need * 3 // 2 + (8 << 20), 32 << 20), 100 << 20))

    out_full = pl.pallas_call(
        decoder_kernel,
        out_shape=jax.ShapeDtypeStruct((b_pad, out_pad), jnp.float32),
        grid=grid,
        in_specs=[
            # Activations: one batch tile per grid step (double-buffered).
            # Last dim == full (unpadded) latent dim -> exempt from 128 rule.
            pl.BlockSpec((tm, latent), lambda i: (i, 0)),
            # Weights / biases: constant block index -> VMEM-resident, never
            # re-fetched across grid steps.
            # TODO(synk): single-buffer these (pipeline_mode=pl.Buffered(1))
            # once verified on the installed jax version; halves resident
            # weight VMEM on v7x for large hidden dims.
            pl.BlockSpec((latent, hidden_p), lambda i: (0, 0)),
            pl.BlockSpec((1, hidden_p), lambda i: (0, 0)),
            pl.BlockSpec((hidden_p, hidden_p), lambda i: (0, 0)),
            pl.BlockSpec((1, hidden_p), lambda i: (0, 0)),
            pl.BlockSpec((hidden_p, out_pad), lambda i: (0, 0)),
            pl.BlockSpec((1, out_pad), lambda i: (0, 0)),
        ],
        out_specs=pl.BlockSpec((tm, out_pad), lambda i: (i, 0)),
        compiler_params=pltpu.CompilerParams(
            dimension_semantics=("parallel",),
            vmem_limit_bytes=vmem_limit),
        cost_estimate=cost,
    )(xp, w1p, b1p, w2p, b2p, w3p, b3p)

    # Under jit this slice fuses downstream; padded rows/cols (zero weight/bias
    # columns -> sigmoid(0)=0.5) are discarded here and never affect real outputs.
    return out_full[:B, :out_dim]


def init_params(key, latent_dim, hidden_dim, output_dim):
    """Logical (unpadded) parameters, stored [in, out] so the kernel computes
    y = x @ W + b (equivalent to PyTorch's x @ W.T with its [out, in] storage)."""
    ks = jax.random.split(key, 6)

    def lin(kw, kb, fan_in, fan_out):
        bound = 1.0 / jnp.sqrt(fan_in)
        w = jax.random.uniform(kw, (fan_in, fan_out), jnp.float32, -bound, bound)
        b = jax.random.uniform(kb, (1, fan_out), jnp.float32, -bound, bound)
        return w, b

    w1, b1 = lin(ks[0], ks[1], latent_dim, hidden_dim)
    w2, b2 = lin(ks[2], ks[3], hidden_dim, hidden_dim)
    w3, b3 = lin(ks[4], ks[5], hidden_dim, output_dim)
    return (w1, b1, w2, b2, w3, b3)


def pad_params(params):
    """One-time (init-time) zero-padding of weights/biases to lane multiples on
    the hidden/output axes.  Layer-1's contraction axis stays at the raw latent
    dim so x is never padded in HBM.  Done once, NOT per forward call."""
    w1, b1, w2, b2, w3, b3 = params
    latent, hidden = w1.shape
    out_dim = w3.shape[1]
    hidden_p = _round_up(hidden, LANE)
    out_pad = _round_up(out_dim, LANE)

    def pad2(a, rows, cols):
        return jnp.pad(a, ((0, rows - a.shape[0]), (0, cols - a.shape[1])))

    return (pad2(w1, latent, hidden_p), pad2(b1, 1, hidden_p),
            pad2(w2, hidden_p, hidden_p), pad2(b2, 1, hidden_p),
            pad2(w3, hidden_p, out_pad), pad2(b3, 1, out_pad))


def decoder_reference(x, params):
    """Pure-JAX reference for correctness check (full f32 matmuls)."""
    w1, b1, w2, b2, w3, b3 = params
    hp = jax.lax.Precision.HIGHEST
    h = jnp.dot(x, w1, precision=hp) + b1
    h = jnp.where(h > 0, h, NEG_SLOPE * h)
    h = jnp.dot(h, w2, precision=hp) + b2
    h = jnp.where(h > 0, h, NEG_SLOPE * h)
    return jax.nn.sigmoid(jnp.dot(h, w3, precision=hp) + b3)


if __name__ == "__main__":
    latent_dim, hidden_dim, output_dim = 16, 32, 64
    batch = 8

    key = jax.random.PRNGKey(0)
    k_x, k_p = jax.random.split(key)
    x = jax.random.normal(k_x, (batch, latent_dim), dtype=jnp.float32)
    params = init_params(k_p, latent_dim, hidden_dim, output_dim)
    padded_params = pad_params(params)   # pad/transpose ONCE at init

    out = decoder_forward(x, padded_params, out_dim=output_dim, block_batch=1024)
    out = jax.block_until_ready(out)

    ref = decoder_reference(x, params)
    assert out.shape == (batch, output_dim)
    assert jnp.allclose(out, ref, atol=2e-5, rtol=2e-5), "mismatch vs reference"

    print("KERNEL_OK")
</pallas_src>

<mosaic_0001>
module attributes {stable_mosaic.version = 11 : i64} {
  func.func @decoder_kernel(%arg0: i32, %arg1: memref<8x16xf32, #tpu.memory_space<vmem>>, %arg2: memref<16x128xf32, #tpu.memory_space<vmem>>, %arg3: memref<1x128xf32, #tpu.memory_space<vmem>>, %arg4: memref<128x128xf32, #tpu.memory_space<vmem>>, %arg5: memref<1x128xf32, #tpu.memory_space<vmem>>, %arg6: memref<128x128xf32, #tpu.memory_space<vmem>>, %arg7: memref<1x128xf32, #tpu.memory_space<vmem>>, %arg8: memref<8x128xf32, #tpu.memory_space<vmem>>) attributes {dimension_semantics = [#tpu.dimension_semantics<parallel>], iteration_bounds = array<i64: 1>, scalar_prefetch = 0 : i64, scratch_operands = 0 : i64, tpu.core_type = #tpu.core_type<tc>, window_params = [{transform_indices = @transform_0, window_bounds = array<i64: 8, 16>}, {pipeline_mode = #tpu.pipeline_mode<synchronous>, transform_indices = @transform_1, window_bounds = array<i64: 16, 128>}, {pipeline_mode = #tpu.pipeline_mode<synchronous>, transform_indices = @transform_2, window_bounds = array<i64: 1, 128>}, {pipeline_mode = #tpu.pipeline_mode<synchronous>, transform_indices = @transform_3, window_bounds = array<i64: 128, 128>}, {pipeline_mode = #tpu.pipeline_mode<synchronous>, transform_indices = @transform_4, window_bounds = array<i64: 1, 128>}, {pipeline_mode = #tpu.pipeline_mode<synchronous>, transform_indices = @transform_5, window_bounds = array<i64: 128, 128>}, {pipeline_mode = #tpu.pipeline_mode<synchronous>, transform_indices = @transform_6, window_bounds = array<i64: 1, 128>}, {transform_indices = @transform_7, window_bounds = array<i64: 8, 128>}]} {
    %c0 = arith.constant 0 : index
    %c0_0 = arith.constant 0 : index
    %0 = vector.load %arg1[%c0, %c0_0] : memref<8x16xf32, #tpu.memory_space<vmem>>, vector<8x16xf32>
    %c0_1 = arith.constant 0 : index
    %c0_2 = arith.constant 0 : index
    %1 = vector.load %arg2[%c0_1, %c0_2] : memref<16x128xf32, #tpu.memory_space<vmem>>, vector<16x128xf32>
    %cst = arith.constant dense<0.000000e+00> : vector<8x128xf32>
    %2 = tpu.matmul %0, %1, %cst {dimension_numbers = #tpu.dot_dimension_numbers<[1], [0], [0], [1], [0, 0, 1, 1], [], []>} : vector<8x16xf32>, vector<16x128xf32>, vector<8x128xf32> -> vector<8x128xf32>
    %c0_3 = arith.constant 0 : index
    %c0_4 = arith.constant 0 : index
    %3 = vector.load %arg3[%c0_3, %c0_4] : memref<1x128xf32, #tpu.memory_space<vmem>>, vector<1x128xf32>
    %4 = vector.broadcast %3 : vector<1x128xf32> to vector<8x128xf32>
    %5 = arith.addf %2, %4 : vector<8x128xf32>
    %cst_5 = arith.constant 0.000000e+00 : f32
    %6 = vector.broadcast %cst_5 : f32 to vector<8x128xf32>
    %7 = arith.cmpf ogt, %5, %6 : vector<8x128xf32>
    %cst_6 = arith.constant 0.00999999977 : f32
    %8 = vector.broadcast %cst_6 : f32 to vector<8x128xf32>
    %9 = arith.mulf %8, %5 : vector<8x128xf32>
    %10 = arith.select %7, %5, %9 : vector<8x128xi1>, vector<8x128xf32>
    %c0_7 = arith.constant 0 : index
    %c0_8 = arith.constant 0 : index
    %11 = vector.load %arg4[%c0_7, %c0_8] : memref<128x128xf32, #tpu.memory_space<vmem>>, vector<128x128xf32>
    %cst_9 = arith.constant dense<0.000000e+00> : vector<8x128xf32>
    %12 = tpu.matmul %10, %11, %cst_9 {dimension_numbers = #tpu.dot_dimension_numbers<[1], [0], [0], [1], [0, 0, 1, 1], [], []>} : vector<8x128xf32>, vector<128x128xf32>, vector<8x128xf32> -> vector<8x128xf32>
    %c0_10 = arith.constant 0 : index
    %c0_11 = arith.constant 0 : index
    %13 = vector.load %arg5[%c0_10, %c0_11] : memref<1x128xf32, #tpu.memory_space<vmem>>, vector<1x128xf32>
    %14 = vector.broadcast %13 : vector<1x128xf32> to vector<8x128xf32>
    %15 = arith.addf %12, %14 : vector<8x128xf32>
    %cst_12 = arith.constant 0.000000e+00 : f32
    %16 = vector.broadcast %cst_12 : f32 to vector<8x128xf32>
    %17 = arith.cmpf ogt, %15, %16 : vector<8x128xf32>
    %cst_13 = arith.constant 0.00999999977 : f32
    %18 = vector.broadcast %cst_13 : f32 to vector<8x128xf32>
    %19 = arith.mulf %18, %15 : vector<8x128xf32>
    %20 = arith.select %17, %15, %19 : vector<8x128xi1>, vector<8x128xf32>
    %c0_14 = arith.constant 0 : index
    %c0_15 = arith.constant 0 : index
    %21 = vector.load %arg6[%c0_14, %c0_15] : memref<128x128xf32, #tpu.memory_space<vmem>>, vector<128x128xf32>
    %cst_16 = arith.constant dense<0.000000e+00> : vector<8x128xf32>
    %22 = tpu.matmul %20, %21, %cst_16 {dimension_numbers = #tpu.dot_dimension_numbers<[1], [0], [0], [1], [0, 0, 1, 1], [], []>} : vector<8x128xf32>, vector<128x128xf32>, vector<8x128xf32> -> vector<8x128xf32>
    %c0_17 = arith.constant 0 : index
    %c0_18 = arith.constant 0 : index
    %23 = vector.load %arg7[%c0_17, %c0_18] : memref<1x128xf32, #tpu.memory_space<vmem>>, vector<1x128xf32>
    %24 = vector.broadcast %23 : vector<1x128xf32> to vector<8x128xf32>
    %25 = arith.addf %22, %24 : vector<8x128xf32>
    %26 = arith.negf %25 : vector<8x128xf32>
    %27 = math.exp %26 : vector<8x128xf32>
    %cst_19 = arith.constant 1.000000e+00 : f32
    %28 = vector.broadcast %cst_19 : f32 to vector<8x128xf32>
    %29 = arith.addf %28, %27 : vector<8x128xf32>
    %30 = arith.divf %28, %29 : vector<8x128xf32>
    %c0_20 = arith.constant 0 : index
    %c0_21 = arith.constant 0 : index
    %31 = vector.load %arg8[%c0_20, %c0_21] : memref<8x128xf32, #tpu.memory_space<vmem>>, vector<8x128xf32>
    tpu.vector_store %arg8[%c0_20, %c0_21], %30 {strides = array<i32>} : memref<8x128xf32, #tpu.memory_space<vmem>>, vector<8x128xf32>,
    return
  }
  func.func @transform_0(%arg0: i32) -> (i32, i32) {
    %c0_i32 = arith.constant 0 : i32
    %c0_i32_0 = arith.constant 0 : i32
    return %arg0, %c0_i32 : i32, i32
  }
  func.func @transform_1(%arg0: i32) -> (i32, i32) {
    %c0_i32 = arith.constant 0 : i32
    %c0_i32_0 = arith.constant 0 : i32
    %c0_i32_1 = arith.constant 0 : i32
    return %c0_i32, %c0_i32_0 : i32, i32
  }
  func.func @transform_2(%arg0: i32) -> (i32, i32) {
    %c0_i32 = arith.constant 0 : i32
    %c0_i32_0 = arith.constant 0 : i32
    %c0_i32_1 = arith.constant 0 : i32
    return %c0_i32, %c0_i32_0 : i32, i32
  }
  func.func @transform_3(%arg0: i32) -> (i32, i32) {
    %c0_i32 = arith.constant 0 : i32
    %c0_i32_0 = arith.constant 0 : i32
    %c0_i32_1 = arith.constant 0 : i32
    return %c0_i32, %c0_i32_0 : i32, i32
  }
  func.func @transform_4(%arg0: i32) -> (i32, i32) {
    %c0_i32 = arith.constant 0 : i32
    %c0_i32_0 = arith.constant 0 : i32
    %c0_i32_1 = arith.constant 0 : i32
    return %c0_i32, %c0_i32_0 : i32, i32
  }
  func.func @transform_5(%arg0: i32) -> (i32, i32) {
    %c0_i32 = arith.constant 0 : i32
    %c0_i32_0 = arith.constant 0 : i32
    %c0_i32_1 = arith.constant 0 : i32
    return %c0_i32, %c0_i32_0 : i32, i32
  }
  func.func @transform_6(%arg0: i32) -> (i32, i32) {
    %c0_i32 = arith.constant 0 : i32
    %c0_i32_0 = arith.constant 0 : i32
    %c0_i32_1 = arith.constant 0 : i32
    return %c0_i32, %c0_i32_0 : i32, i32
  }
  func.func @transform_7(%arg0: i32) -> (i32, i32) {
    %c0_i32 = arith.constant 0 : i32
    %c0_i32_0 = arith.constant 0 : i32
    return %arg0, %c0_i32 : i32, i32
  }
}

</mosaic_0001>

<llo_original>
// kernel: decoder_forward.1
$region0: #{decoder_forward.1}
  #allocation0 [shape = 'u32[]', space=smem, size = 0x4, offset = 0x4, fixed_abs, tag = 'smem constant byte address 0x4 - core index']
  #allocation1 [shape = 'u32[72,128]{1,0:T(1,128)}', space=vmem, size = 0x9000, scoped, tag = 'internal scratch']
  %s0 = inlined_call_operand.hbm [shape: f32[8,16], index: 0, kind: input, shape index: {}]
  %s1 = inlined_call_operand.hbm [shape: f32[16,128], index: 1, kind: input, shape index: {}]
  %s2 = inlined_call_operand.vmem [shape: f32[1,128], index: 2, kind: input, shape index: {}]
  %s3 = inlined_call_operand.hbm [shape: f32[128,128], index: 3, kind: input, shape index: {}]
  %s4 = inlined_call_operand.vmem [shape: f32[1,128], index: 4, kind: input, shape index: {}]
  %s5 = inlined_call_operand.hbm [shape: f32[128,128], index: 5, kind: input, shape index: {}]
  %s6 = inlined_call_operand.vmem [shape: f32[1,128], index: 6, kind: input, shape index: {}]
  %s7 = inlined_call_operand.hbm [shape: f32[8,128], index: 7, kind: output, shape index: {}]
  %s8 = sld [smem:[#allocation0]]
  $region54: #{decoder_forward.1} parent=0
    _
  %s10 = ssub.s32 1, %s8
  %s11 = scalar_select 0, %s10, %s8
  $region1: #{decoder_forward.1} parent=0
    #allocation2 [shape = 'u8[4096]{0}', space=vmem, size = 0x1000, scoped, tag = 'input window, operand 0, single buffered']
    #allocation3 [shape = 's32[1]{0}', space=sflag, size = 0x4, scoped, tag = 'scoped memory for decoder_forward.1']
    #allocation4 [shape = 's32[1]{0}', space=sflag, size = 0x4, scoped, tag = 'scoped memory for decoder_forward.1']
    #allocation5 [shape = 'u8[8192]{0}', space=vmem, size = 0x2000, scoped, tag = 'input window, operand 1, single buffered']
    #allocation6 [shape = 's32[1]{0}', space=sflag, size = 0x4, scoped, tag = 'scoped memory for decoder_forward.1']
    #allocation7 [shape = 'u8[65536]{0}', space=vmem, size = 0x10000, scoped, tag = 'input window, operand 3, single buffered']
    #allocation8 [shape = 'u8[65536]{0}', space=vmem, size = 0x10000, scoped, tag = 'input window, operand 5, single buffered']
    #allocation9 [shape = 's32[1]{0}', space=sflag, size = 0x4, scoped, tag = 'scoped memory for decoder_forward.1']
    #allocation10 [shape = 'u8[4096]{0}', space=vmem, size = 0x1000, scoped, tag = 'output window, operand 0, single buffered']
    %12 = vsyncpa [#allocation3], 0
    %13 = vsyncpa [#allocation6], 0
    %14 = vsyncpa [#allocation9], 0
    %15 = vsyncpa [#allocation4], 0
    // Predicated region
    $region2: #{decoder_forward.1} parent=1 // pred_check
      _
    $region3: #{decoder_forward.1} parent=1 // pred_check_branch
      %17 = sbr.rel (0) target = $region5
    $region4: #{decoder_forward.1} parent=1 // pred_region
      %19 = vsyncadd [#allocation3], 0
      %s21 = sshll.u32 %s0, 4
      %s22 = int_to_ptr.hbm [resolvable:$true] %s21
      %s23 = sshll.u32 [#allocation2], 4
      %s24 = int_to_ptr.vmem [resolvable:$true] %s23
      %26 = dma.hbm_to_vmem [thread:$0]  %s22, 128, %s24, [#allocation3]
    $region5: #{decoder_forward.1} parent=1 // pred_fallthru
      _
    // Predicated region
    $region6: #{decoder_forward.1} parent=1 // pred_check
      _
    $region7: #{decoder_forward.1} parent=1 // pred_check_branch
      %28 = sbr.rel (0) target = $region9
    $region8: #{decoder_forward.1} parent=1 // pred_region
      %30 = vsyncadd [#allocation6], 0
      %s31 = sshll.u32 %s1, 4
      %s32 = int_to_ptr.hbm [resolvable:$true] %s31
      %s33 = sshll.u32 [#allocation5], 4
      %s34 = int_to_ptr.vmem [resolvable:$true] %s33
      %39 = dma.hbm_to_vmem [thread:$0]  %s32, 256, %s34, [#allocation6], 128, 128, 8
    $region9: #{decoder_forward.1} parent=1 // pred_fallthru
      _
    // Predicated region
    $region10: #{decoder_forward.1} parent=1 // pred_check
      _
    $region11: #{decoder_forward.1} parent=1 // pred_check_branch
      %41 = sbr.rel (0) target = $region13
    $region12: #{decoder_forward.1} parent=1 // pred_region
      _
    $region13: #{decoder_forward.1} parent=1 // pred_fallthru
      _
    // Predicated region
    $region14: #{decoder_forward.1} parent=1 // pred_check
      _
    $region15: #{decoder_forward.1} parent=1 // pred_check_branch
      %43 = sbr.rel (0) target = $region17
    $region16: #{decoder_forward.1} parent=1 // pred_region
      %45 = vsyncadd [#allocation6], 0
      %s46 = sshll.u32 %s3, 4
      %s47 = int_to_ptr.hbm [resolvable:$true] %s46
      %s48 = sshll.u32 [#allocation7], 4
      %s49 = int_to_ptr.vmem [resolvable:$true] %s48
      %54 = dma.hbm_to_vmem [thread:$0]  %s47, 2048, %s49, [#allocation6], 128, 128, 8
    $region17: #{decoder_forward.1} parent=1 // pred_fallthru
      _
    // Predicated region
    $region18: #{decoder_forward.1} parent=1 // pred_check
      _
    $region19: #{decoder_forward.1} parent=1 // pred_check_branch
      %56 = sbr.rel (0) target = $region21
    $region20: #{decoder_forward.1} parent=1 // pred_region
      _
    $region21: #{decoder_forward.1} parent=1 // pred_fallthru
      _
    // Predicated region
    $region22: #{decoder_forward.1} parent=1 // pred_check
      _
    $region23: #{decoder_forward.1} parent=1 // pred_check_branch
      %58 = sbr.rel (0) target = $region25
    $region24: #{decoder_forward.1} parent=1 // pred_region
      %60 = vsyncadd [#allocation9], 0
      %s61 = sshll.u32 %s5, 4
      %s62 = int_to_ptr.hbm [resolvable:$true] %s61
      %s63 = sshll.u32 [#allocation8], 4
      %s64 = int_to_ptr.vmem [resolvable:$true] %s63
      %69 = dma.hbm_to_vmem [thread:$0]  %s62, 2048, %s64, [#allocation9], 128, 128, 8
    $region25: #{decoder_forward.1} parent=1 // pred_fallthru
      _
    // Predicated region
    $region26: #{decoder_forward.1} parent=1 // pred_check
      _
    $region27: #{decoder_forward.1} parent=1 // pred_check_branch
      %71 = sbr.rel (0) target = $region29
    $region28: #{decoder_forward.1} parent=1 // pred_region
      _
    $region29: #{decoder_forward.1} parent=1 // pred_fallthru
      _
    // Predicated region
    $region30: #{decoder_forward.1} parent=1 // pred_check
      _
    $region31: #{decoder_forward.1} parent=1 // pred_check_branch
      %73 = sbr.rel (0) target = $region33
    $region32: #{decoder_forward.1} parent=1 // pred_region
      %75 = dma.done [#allocation3], 128
    $region33: #{decoder_forward.1} parent=1 // pred_fallthru
      _
    // Predicated region
    $region34: #{decoder_forward.1} parent=1 // pred_check
      _
    $region35: #{decoder_forward.1} parent=1 // pred_check_branch
      %77 = sbr.rel (0) target = $region37
    $region36: #{decoder_forward.1} parent=1 // pred_region
      %79 = dma.done [#allocation6], 256
    $region37: #{decoder_forward.1} parent=1 // pred_fallthru
      _
    // Predicated region
    $region38: #{decoder_forward.1} parent=1 // pred_check
      _
    $region39: #{decoder_forward.1} parent=1 // pred_check_branch
      %81 = sbr.rel (0) target = $region41
    $region40: #{decoder_forward.1} parent=1 // pred_region
      %83 = dma.done [#allocation6], 2048
    $region41: #{decoder_forward.1} parent=1 // pred_fallthru
      _
    // Predicated region
    $region42: #{decoder_forward.1} parent=1 // pred_check
      _
    $region43: #{decoder_forward.1} parent=1 // pred_check_branch
      %85 = sbr.rel (0) target = $region45
    $region44: #{decoder_forward.1} parent=1 // pred_region
      %87 = dma.done [#allocation9], 2048
    $region45: #{decoder_forward.1} parent=1 // pred_fallthru
      _
    %v88 = vld [vmem:[#allocation2] sm:$0xff]
    %v89 = vld [vmem:[#allocation5] sm:$0xff]
    %v90 = vld [vmem:[#allocation5 + $0x8] sm:$0xff]
    %v91 = vld [vmem:[%s2] sm:$0x1]
    %v93 = vperm.slane %v91, 0
    %vm95 = vcmask 130048
    %v97 = vsel %vm95, %v88, 0
    %99 = vmatpush.msra.mxu0 0.0
    %100 = vmatpush.msra.mxu0 0.0
    %101 = vmatpush.msra.mxu0 0.0
    %102 = vmatpush.msra.mxu0 0.0
    %103 = vmatpush.msra.mxu0 0.0
    %104 = vmatpush.msra.mxu0 0.0
    %105 = vmatpush.msra.mxu0 0.0
    %106 = vmatpush.msra.mxu0 0.0
    %107 = vmatpush.msra.mxu0 0.0
    %108 = vmatpush.msra.mxu0 0.0
    %109 = vmatpush.msra.mxu0 0.0
    %110 = vmatpush.msra.mxu0 0.0
    %111 = vmatpush.msra.mxu0 0.0
    %112 = vmatpush.msra.mxu0 0.0
    %113 = vmatpush.msra.mxu0 %v90
    %114 = vmatpush.msra.mxu0 %v89
    %115 = vmatmul.f32.gmra.mxu0 %v97
    %v116 = vpop.f32.mrf.mxu0
    %v117 = vadd.f32 %v93, %v116
    %118 = vdwg.mxu0
    %vm119 = vcmp.gt.f32.partialorder %v117, 0.0
    %v120 = vmul.f32 %v117, 0.01
    %v121 = vsel %vm119, %v117, %v120
    %v122 = vld [vmem:[#allocation7] sm:$0xff]
    %v123 = vld [vmem:[#allocation7 + $0x8] sm:$0xff]
    %v124 = vld [vmem:[#allocation7 + $0x10] sm:$0xff]
    %v125 = vld [vmem:[#allocation7 + $0x18] sm:$0xff]
    %v126 = vld [vmem:[#allocation7 + $0x20] sm:$0xff]
    %v127 = vld [vmem:[#allocation7 + $0x28] sm:$0xff]
    %v128 = vld [vmem:[#allocation7 + $0x30] sm:$0xff]
    %v129 = vld [vmem:[#allocation7 + $0x38] sm:$0xff]
    %v130 = vld [vmem:[#allocation7 + $0x40] sm:$0xff]
    %v131 = vld [vmem:[#allocation7 + $0x48] sm:$0xff]
    %v132 = vld [vmem:[#allocation7 + $0x50] sm:$0xff]
    %v133 = vld [vmem:[#allocation7 + $0x58] sm:$0xff]
    %v134 = vld [vmem:[#allocation7 + $0x60] sm:$0xff]
    %v135 = vld [vmem:[#allocation7 + $0x68] sm:$0xff]
    %v136 = vld [vmem:[#allocation7 + $0x70] sm:$0xff]
    %v137 = vld [vmem:[#allocation7 + $0x78] sm:$0xff]
    %v138 = vld [vmem:[%s4] sm:$0x1]
    %v140 = vperm.slane %v138, 0
    %142 = vmatpush.msra.mxu0 %v137
    %143 = vmatpush.msra.mxu0 %v136
    %144 = vmatpush.msra.mxu0 %v135
    %145 = vmatpush.msra.mxu0 %v134
    %146 = vmatpush.msra.mxu0 %v133
    %147 = vmatpush.msra.mxu0 %v132
    %148 = vmatpush.msra.mxu0 %v131
    %149 = vmatpush.msra.mxu0 %v130
    %150 = vmatpush.msra.mxu0 %v129
    %151 = vmatpush.msra.mxu0 %v128
    %152 = vmatpush.msra.mxu0 %v127
    %153 = vmatpush.msra.mxu0 %v126
    %154 = vmatpush.msra.mxu0 %v125
    %155 = vmatpush.msra.mxu0 %v124
    %156 = vmatpush.msra.mxu0 %v123
    %157 = vmatpush.msra.mxu0 %v122
    %158 = vmatmul.f32.gmra.mxu0 %v121
    %v159 = vpop.f32.mrf.mxu0
    %v160 = vadd.f32 %v140, %v159
    %161 = vdwg.mxu0
    %vm162 = vcmp.gt.f32.partialorder %v160, 0.0
    %v163 = vmul.f32 %v160, 0.01
    %v164 = vsel %vm162, %v160, %v163
    %v165 = vld [vmem:[#allocation8] sm:$0xff]
    %v166 = vld [vmem:[#allocation8 + $0x8] sm:$0xff]
    %v167 = vld [vmem:[#allocation8 + $0x10] sm:$0xff]
    %v168 = vld [vmem:[#allocation8 + $0x18] sm:$0xff]
    %v169 = vld [vmem:[#allocation8 + $0x20] sm:$0xff]
    %v170 = vld [vmem:[#allocation8 + $0x28] sm:$0xff]
    %v171 = vld [vmem:[#allocation8 + $0x30] sm:$0xff]
    %v172 = vld [vmem:[#allocation8 + $0x38] sm:$0xff]
    %v173 = vld [vmem:[#allocation8 + $0x40] sm:$0xff]
    %v174 = vld [vmem:[#allocation8 + $0x48] sm:$0xff]
    %v175 = vld [vmem:[#allocation8 + $0x50] sm:$0xff]
    %v176 = vld [vmem:[#allocation8 + $0x58] sm:$0xff]
    %v177 = vld [vmem:[#allocation8 + $0x60] sm:$0xff]
    %v178 = vld [vmem:[#allocation8 + $0x68] sm:$0xff]
    %v179 = vld [vmem:[#allocation8 + $0x70] sm:$0xff]
    %v180 = vld [vmem:[#allocation8 + $0x78] sm:$0xff]
    %v181 = vld [vmem:[%s6] sm:$0x1]
    %v183 = vperm.slane %v181, 0
    %185 = vmatpush.msra.mxu0 %v180
    %186 = vmatpush.msra.mxu0 %v179
    %187 = vmatpush.msra.mxu0 %v178
    %188 = vmatpush.msra.mxu0 %v177
    %189 = vmatpush.msra.mxu0 %v176
    %190 = vmatpush.msra.mxu0 %v175
    %191 = vmatpush.msra.mxu0 %v174
    %192 = vmatpush.msra.mxu0 %v173
    %193 = vmatpush.msra.mxu0 %v172
    %194 = vmatpush.msra.mxu0 %v171
    %195 = vmatpush.msra.mxu0 %v170
    %196 = vmatpush.msra.mxu0 %v169
    %197 = vmatpush.msra.mxu0 %v168
    %198 = vmatpush.msra.mxu0 %v167
    %199 = vmatpush.msra.mxu0 %v166
    %200 = vmatpush.msra.mxu0 %v165
    %201 = vmatmul.f32.gmra.mxu0 %v164
    %v202 = vpop.f32.mrf.mxu0
    %v203 = vadd.f32 %v183, %v202
    %204 = vdwg.mxu0
    %v205 = vxor.u32 %v203, 2147483648
    %v206 = vmul.f32 %v205, 1.442695
    %v207 = vpow.pop %v206
    %v208 = vadd.f32 %v207, 1.0
    %v209 = vrcp.pop %v208
    %v210 = vmul.f32 %v208, %v209
    %v211 = vsub.f32 1.0, %v210
    %v212 = vmul.f32 %v209, %v211
    %v213 = vadd.f32 %v209, %v212
    %vm214 = vweird.f32 %v208
    %vm215 = vweird.f32 %v209
    %vm216 = vmor %vm214, %vm215
    %v217 = vsel %vm216, %v209, %v213
    %v218 = vand.u32 2147483647, %v208
    %vm219 = vcmp.eq.f32.partialorder %v218, 8.507059e+37
    %v220 = vand.u32 %v208, 2147483648
    %v221 = vor.u32 1.1754944e-38, %v220
    %v222 = vsel %vm219, %v221, %v217
    %v223 = vmul.f32 1.0, %v222
    %224 = vst [vmem:[#allocation10] sm:$0xff] %v223
    // Predicated region
    $region46: #{decoder_forward.1} parent=1 // pred_check
      _
    $region47: #{decoder_forward.1} parent=1 // pred_check_branch
      %226 = sbr.rel (0) target = $region49
    $region48: #{decoder_forward.1} parent=1 // pred_region
      %228 = vsyncadd [#allocation4], 0
      %s230 = sshll.u32 [#allocation10], 4
      %s231 = int_to_ptr.vmem [resolvable:$true] %s230
      %s232 = sshll.u32 %s7, 4
      %s233 = int_to_ptr.hbm [resolvable:$true] %s232
      %235 = dma.vmem_to_hbm [thread:$0]  %s231, 128, %s233, [#allocation4]
    $region49: #{decoder_forward.1} parent=1 // pred_fallthru
      _
    // Predicated region
    $region50: #{decoder_forward.1} parent=1 // pred_check
      _
    $region51: #{decoder_forward.1} parent=1 // pred_check_branch
      %237 = sbr.rel (0) target = $region53
    $region52: #{decoder_forward.1} parent=1 // pred_region
      %239 = dma.done [#allocation4], 128
    $region53: #{decoder_forward.1} parent=1 // pred_fallthru
      _
    %240 = vsyncpa [#allocation3], 1
    %241 = vsyncpa [#allocation6], 1
    %242 = vsyncpa [#allocation9], 1
    %243 = vsyncpa [#allocation4], 1

</llo_original>
